<compile_context>
chip_gen: v5e
topology: v5e:2x2
jax: 0.10.0
libtpu: 0.0.40
codegen_flags: <defaults>
</compile_context>

<pallas_src>
import functools

import jax
import jax.numpy as jnp
from jax.experimental import pallas as pl
from jax.experimental.pallas import tpu as pltpu

LANE = 128      # lane width (fixed by hardware vreg layout)
MAX_BM = 1024   # max sublane rows per grid step (sweepable; safe on v5e/v6e/v7x)


def _dice_partial_kernel(x_ref, y_ref, out_ref, *, alpha):
    """Per-block partial sums of dsc, reduced to an (8, LANE) lane-dense tile."""
    x = x_ref[...].astype(jnp.float32)
    y = y_ref[...].astype(jnp.float32)

    p = jax.nn.sigmoid(x)
    w = (1.0 - p) ** alpha          # integer alpha -> VALU multiplies (no exp/log)
    wp = w * p
    num = 2.0 * wp * y
    den = wp + y
    dsc = num + 1.0 / den + 1.0

    bm = x.shape[0]
    # Split the leading (sublane-major) dim: layout-preserving, then reduce the
    # leading axis with plain cross-vreg VALU adds (no XLU cross-lane work).
    out_ref[...] = jnp.sum(dsc.reshape(bm // 8, 8, LANE), axis=0)


def adjustive_dice_loss(logits, targets, alpha=2, eps=1e-07):
    del eps  # unused in the original PyTorch forward as well
    n = logits.size
    x = logits.reshape(-1)
    y = targets.reshape(-1)

    # Pad to the minimal (8, 128) tile; for large inputs pad further so BM
    # divides rows (keeps every block fully in-bounds, waste <= MAX_BM*LANE).
    min_chunk = 8 * LANE
    padded = ((n + min_chunk - 1) // min_chunk) * min_chunk
    rows = padded // LANE
    if rows > MAX_BM:
        bm = MAX_BM
        rows = ((rows + bm - 1) // bm) * bm
        padded = rows * LANE
    else:
        bm = rows
    pad = padded - n
    if pad:
        x = jnp.pad(x, (0, pad))
        y = jnp.pad(y, (0, pad))

    x = x.reshape(rows, LANE)
    y = y.reshape(rows, LANE)
    num_blocks = rows // bm

    partials = pl.pallas_call(
        functools.partial(_dice_partial_kernel, alpha=alpha),
        out_shape=jax.ShapeDtypeStruct((num_blocks * 8, LANE), jnp.float32),
        grid_spec=pl.GridSpec(
            grid=(num_blocks,),
            in_specs=[
                pl.BlockSpec((bm, LANE), lambda i: (i, 0)),
                pl.BlockSpec((bm, LANE), lambda i: (i, 0)),
            ],
            out_specs=pl.BlockSpec((8, LANE), lambda i: (i, 0)),
        ),
        compiler_params=pltpu.CompilerParams(
            dimension_semantics=("parallel",)),
    )(x, y)

    total = jnp.sum(partials)

    if pad:
        # Analytic contribution of a zero-padded element (x=0, y=0), computed
        # with the exact same f32 ops as the kernel: subtract it off.
        p_pad = jax.nn.sigmoid(jnp.float32(0.0))
        w_pad = (1.0 - p_pad) ** alpha
        dsc_pad = 1.0 / (w_pad * p_pad) + 1.0
        total = total - jnp.float32(pad) * dsc_pad

    return 1.0 - total / jnp.float32(n)


def _reference(logits, targets, alpha=2):
    p = jax.nn.sigmoid(logits.astype(jnp.float32))
    y = targets.astype(jnp.float32)
    num = 2.0 * (1.0 - p) ** alpha * p * y
    den = (1.0 - p) ** alpha * p + y
    dsc = num + 1.0 / den + 1.0
    return 1.0 - jnp.mean(dsc)


if __name__ == "__main__":
    key = jax.random.PRNGKey(0)
    k1, k2 = jax.random.split(key)

    # Small shapes consistent with a segmentation-style loss: NCHW (2,4,16,16).
    logits = jax.random.normal(k1, (2, 4, 16, 16), dtype=jnp.float32)
    targets = (jax.random.uniform(k2, (2, 4, 16, 16)) > 0.5).astype(jnp.float32)

    loss = adjustive_dice_loss(logits, targets, alpha=2)
    loss = jax.block_until_ready(loss)

    ref = _reference(logits, targets, alpha=2)
    assert jnp.allclose(loss, ref, rtol=1e-5, atol=1e-5), (loss, ref)

    print("KERNEL_OK")
</pallas_src>

<mosaic_0001>
module attributes {stable_mosaic.version = 11 : i64} {
  func.func @_dice_partial_kernel(%arg0: i32, %arg1: memref<16x128xf32, #tpu.memory_space<vmem>>, %arg2: memref<16x128xf32, #tpu.memory_space<vmem>>, %arg3: memref<8x128xf32, #tpu.memory_space<vmem>>) attributes {dimension_semantics = [#tpu.dimension_semantics<parallel>], iteration_bounds = array<i64: 1>, scalar_prefetch = 0 : i64, scratch_operands = 0 : i64, tpu.core_type = #tpu.core_type<tc>, window_params = [{transform_indices = @transform_0, window_bounds = array<i64: 16, 128>}, {transform_indices = @transform_1, window_bounds = array<i64: 16, 128>}, {transform_indices = @transform_2, window_bounds = array<i64: 8, 128>}]} {
    %c0 = arith.constant 0 : index
    %c0_0 = arith.constant 0 : index
    %0 = vector.load %arg1[%c0, %c0_0] : memref<16x128xf32, #tpu.memory_space<vmem>>, vector<16x128xf32>
    %c0_1 = arith.constant 0 : index
    %c0_2 = arith.constant 0 : index
    %1 = vector.load %arg2[%c0_1, %c0_2] : memref<16x128xf32, #tpu.memory_space<vmem>>, vector<16x128xf32>
    %2 = arith.negf %0 : vector<16x128xf32>
    %3 = math.exp %2 : vector<16x128xf32>
    %cst = arith.constant 1.000000e+00 : f32
    %4 = vector.broadcast %cst : f32 to vector<16x128xf32>
    %5 = arith.addf %4, %3 : vector<16x128xf32>
    %6 = arith.divf %4, %5 : vector<16x128xf32>
    %cst_3 = arith.constant 1.000000e+00 : f32
    %7 = vector.broadcast %cst_3 : f32 to vector<16x128xf32>
    %8 = arith.subf %7, %6 : vector<16x128xf32>
    %9 = arith.mulf %8, %8 : vector<16x128xf32>
    %10 = arith.mulf %9, %6 : vector<16x128xf32>
    %cst_4 = arith.constant 2.000000e+00 : f32
    %11 = vector.broadcast %cst_4 : f32 to vector<16x128xf32>
    %12 = arith.mulf %11, %10 : vector<16x128xf32>
    %13 = arith.mulf %12, %1 : vector<16x128xf32>
    %14 = arith.addf %10, %1 : vector<16x128xf32>
    %cst_5 = arith.constant 1.000000e+00 : f32
    %15 = vector.broadcast %cst_5 : f32 to vector<16x128xf32>
    %16 = arith.divf %15, %14 : vector<16x128xf32>
    %17 = arith.addf %13, %16 : vector<16x128xf32>
    %cst_6 = arith.constant 1.000000e+00 : f32
    %18 = vector.broadcast %cst_6 : f32 to vector<16x128xf32>
    %19 = arith.addf %17, %18 : vector<16x128xf32>
    %20 = vector.shape_cast %19 : vector<16x128xf32> to vector<2x8x128xf32>
    %cst_7 = arith.constant dense<0.000000e+00> : vector<8x128xf32>
    %21 = vector.multi_reduction <add>, %20, %cst_7 [0] : vector<2x8x128xf32> to vector<8x128xf32>
    %c0_8 = arith.constant 0 : index
    %c0_9 = arith.constant 0 : index
    %22 = vector.load %arg3[%c0_8, %c0_9] : memref<8x128xf32, #tpu.memory_space<vmem>>, vector<8x128xf32>
    tpu.vector_store %arg3[%c0_8, %c0_9], %21 {strides = array<i32>} : memref<8x128xf32, #tpu.memory_space<vmem>>, vector<8x128xf32>,
    return
  }
  func.func @transform_0(%arg0: i32) -> (i32, i32) {
    %c0_i32 = arith.constant 0 : i32
    %c0_i32_0 = arith.constant 0 : i32
    return %arg0, %c0_i32 : i32, i32
  }
  func.func @transform_1(%arg0: i32) -> (i32, i32) {
    %c0_i32 = arith.constant 0 : i32
    %c0_i32_0 = arith.constant 0 : i32
    return %arg0, %c0_i32 : i32, i32
  }
  func.func @transform_2(%arg0: i32) -> (i32, i32) {
    %c0_i32 = arith.constant 0 : i32
    %c0_i32_0 = arith.constant 0 : i32
    return %arg0, %c0_i32 : i32, i32
  }
}

</mosaic_0001>

<llo_original>
// kernel: tpu_custom_call.1
$region0: #{tpu_custom_call.1}
  #allocation0 [shape = 'u32[]', space=smem, size = 0x4, offset = 0x4, fixed_abs, tag = 'smem constant byte address 0x4 - core index']
  #allocation1 [shape = 'u32[72,128]{1,0:T(1,128)}', space=vmem, size = 0x9000, scoped, tag = 'internal scratch']
  %s0 = inlined_call_operand.hbm [shape: f32[16,128], index: 0, kind: input, shape index: {}]
  %s1 = inlined_call_operand.hbm [shape: f32[16,128], index: 1, kind: input, shape index: {}]
  %s2 = inlined_call_operand.hbm [shape: f32[8,128], index: 2, kind: output, shape index: {}]
  %s3 = sld [smem:[#allocation0]]
  $region26: #{tpu_custom_call.1} parent=0
    _
  %s5 = ssub.s32 1, %s3
  %s6 = scalar_select 0, %s5, %s3
  $region1: #{tpu_custom_call.1} parent=0
    #allocation2 [shape = 'u8[8192]{0}', space=vmem, size = 0x2000, scoped, tag = 'input window, operand 0, single buffered']
    #allocation3 [shape = 's32[1]{0}', space=sflag, size = 0x4, scoped, tag = 'scoped memory for tpu_custom_call.1']
    #allocation4 [shape = 's32[1]{0}', space=sflag, size = 0x4, scoped, tag = 'scoped memory for tpu_custom_call.1']
    #allocation5 [shape = 'u8[8192]{0}', space=vmem, size = 0x2000, scoped, tag = 'input window, operand 1, single buffered']
    #allocation6 [shape = 's32[1]{0}', space=sflag, size = 0x4, scoped, tag = 'scoped memory for tpu_custom_call.1']
    #allocation7 [shape = 'u8[4096]{0}', space=vmem, size = 0x1000, scoped, tag = 'output window, operand 0, single buffered']
    %7 = vsyncpa [#allocation3], 0
    %8 = vsyncpa [#allocation6], 0
    %9 = vsyncpa [#allocation4], 0
    // Predicated region
    $region2: #{tpu_custom_call.1} parent=1 // pred_check
      _
    $region3: #{tpu_custom_call.1} parent=1 // pred_check_branch
      %11 = sbr.rel (0) target = $region5
    $region4: #{tpu_custom_call.1} parent=1 // pred_region
      %13 = vsyncadd [#allocation3], 0
      %s14 = sshll.u32 %s0, 4
      %s15 = int_to_ptr.hbm [resolvable:$true] %s14
      %s16 = sshll.u32 [#allocation2], 4
      %s17 = int_to_ptr.vmem [resolvable:$true] %s16
      %22 = dma.hbm_to_vmem [thread:$0]  %s15, 256, %s17, [#allocation3], 128, 128, 8
    $region5: #{tpu_custom_call.1} parent=1 // pred_fallthru
      _
    // Predicated region
    $region6: #{tpu_custom_call.1} parent=1 // pred_check
      _
    $region7: #{tpu_custom_call.1} parent=1 // pred_check_branch
      %24 = sbr.rel (0) target = $region9
    $region8: #{tpu_custom_call.1} parent=1 // pred_region
      %26 = vsyncadd [#allocation6], 0
      %s27 = sshll.u32 %s1, 4
      %s28 = int_to_ptr.hbm [resolvable:$true] %s27
      %s29 = sshll.u32 [#allocation5], 4
      %s30 = int_to_ptr.vmem [resolvable:$true] %s29
      %35 = dma.hbm_to_vmem [thread:$0]  %s28, 256, %s30, [#allocation6], 128, 128, 8
    $region9: #{tpu_custom_call.1} parent=1 // pred_fallthru
      _
    // Predicated region
    $region10: #{tpu_custom_call.1} parent=1 // pred_check
      _
    $region11: #{tpu_custom_call.1} parent=1 // pred_check_branch
      %37 = sbr.rel (0) target = $region13
    $region12: #{tpu_custom_call.1} parent=1 // pred_region
      %39 = dma.done [#allocation3], 256
    $region13: #{tpu_custom_call.1} parent=1 // pred_fallthru
      _
    // Predicated region
    $region14: #{tpu_custom_call.1} parent=1 // pred_check
      _
    $region15: #{tpu_custom_call.1} parent=1 // pred_check_branch
      %41 = sbr.rel (0) target = $region17
    $region16: #{tpu_custom_call.1} parent=1 // pred_region
      %43 = dma.done [#allocation6], 256
    $region17: #{tpu_custom_call.1} parent=1 // pred_fallthru
      _
    %v44 = vld [vmem:[#allocation2] sm:$0xff]
    %v45 = vld [vmem:[#allocation2 + $0x8] sm:$0xff]
    %v46 = vld [vmem:[#allocation5] sm:$0xff]
    %v47 = vld [vmem:[#allocation5 + $0x8] sm:$0xff]
    %v48 = vxor.u32 %v44, 2147483648
    %v49 = vxor.u32 %v45, 2147483648
    %v50 = vmul.f32 %v48, 1.442695
    %v51 = vpow.pop %v50
    %v52 = vmul.f32 %v49, 1.442695
    %v53 = vpow.pop %v52
    %v54 = vadd.f32 %v51, 1.0
    %v55 = vadd.f32 %v53, 1.0
    %v56 = vrcp.pop %v54
    %v57 = vmul.f32 %v54, %v56
    %v58 = vsub.f32 1.0, %v57
    %v59 = vmul.f32 %v56, %v58
    %v60 = vadd.f32 %v56, %v59
    %vm61 = vweird.f32 %v54
    %vm62 = vweird.f32 %v56
    %vm63 = vmor %vm61, %vm62
    %v64 = vsel %vm63, %v56, %v60
    %v65 = vand.u32 2147483647, %v54
    %vm66 = vcmp.eq.f32.partialorder %v65, 8.507059e+37
    %v67 = vand.u32 %v54, 2147483648
    %v68 = vor.u32 1.1754944e-38, %v67
    %v69 = vsel %vm66, %v68, %v64
    %v70 = vmul.f32 1.0, %v69
    %v71 = vrcp.pop %v55
    %v72 = vmul.f32 %v55, %v71
    %v73 = vsub.f32 1.0, %v72
    %v74 = vmul.f32 %v71, %v73
    %v75 = vadd.f32 %v71, %v74
    %vm76 = vweird.f32 %v55
    %vm77 = vweird.f32 %v71
    %vm78 = vmor %vm76, %vm77
    %v79 = vsel %vm78, %v71, %v75
    %v80 = vand.u32 2147483647, %v55
    %vm81 = vcmp.eq.f32.partialorder %v80, 8.507059e+37
    %v82 = vand.u32 %v55, 2147483648
    %v83 = vor.u32 1.1754944e-38, %v82
    %v84 = vsel %vm81, %v83, %v79
    %v85 = vmul.f32 1.0, %v84
    %v86 = vsub.f32 1.0, %v70
    %v87 = vsub.f32 1.0, %v85
    %v88 = vmul.f32 %v86, %v86
    %v89 = vmul.f32 %v87, %v87
    %v90 = vmul.f32 %v88, %v70
    %v91 = vmul.f32 %v89, %v85
    %v92 = vmul.f32 %v90, 2.0
    %v93 = vmul.f32 %v91, 2.0
    %v94 = vmul.f32 %v92, %v46
    %v95 = vmul.f32 %v93, %v47
    %v96 = vadd.f32 %v90, %v46
    %v97 = vadd.f32 %v91, %v47
    %v98 = vrcp.pop %v96
    %v99 = vmul.f32 %v96, %v98
    %v100 = vsub.f32 1.0, %v99
    %v101 = vmul.f32 %v98, %v100
    %v102 = vadd.f32 %v98, %v101
    %vm103 = vweird.f32 %v96
    %vm104 = vweird.f32 %v98
    %vm105 = vmor %vm103, %vm104
    %v106 = vsel %vm105, %v98, %v102
    %v107 = vand.u32 2147483647, %v96
    %vm108 = vcmp.eq.f32.partialorder %v107, 8.507059e+37
    %v109 = vand.u32 %v96, 2147483648
    %v110 = vor.u32 1.1754944e-38, %v109
    %v111 = vsel %vm108, %v110, %v106
    %v112 = vmul.f32 1.0, %v111
    %v113 = vrcp.pop %v97
    %v114 = vmul.f32 %v97, %v113
    %v115 = vsub.f32 1.0, %v114
    %v116 = vmul.f32 %v113, %v115
    %v117 = vadd.f32 %v113, %v116
    %vm118 = vweird.f32 %v97
    %vm119 = vweird.f32 %v113
    %vm120 = vmor %vm118, %vm119
    %v121 = vsel %vm120, %v113, %v117
    %v122 = vand.u32 2147483647, %v97
    %vm123 = vcmp.eq.f32.partialorder %v122, 8.507059e+37
    %v124 = vand.u32 %v97, 2147483648
    %v125 = vor.u32 1.1754944e-38, %v124
    %v126 = vsel %vm123, %v125, %v121
    %v127 = vmul.f32 1.0, %v126
    %v128 = vadd.f32 %v94, %v112
    %v129 = vadd.f32 %v95, %v127
    %v130 = vadd.f32 %v128, 1.0
    %v131 = vadd.f32 %v129, 1.0
    %v132 = vadd.f32 %v130, %v131
    %133 = vst [vmem:[#allocation7] sm:$0xff] %v132
    // Predicated region
    $region18: #{tpu_custom_call.1} parent=1 // pred_check
      _
    $region19: #{tpu_custom_call.1} parent=1 // pred_check_branch
      %135 = sbr.rel (0) target = $region21
    $region20: #{tpu_custom_call.1} parent=1 // pred_region
      %137 = vsyncadd [#allocation4], 0
      %s139 = sshll.u32 [#allocation7], 4
      %s140 = int_to_ptr.vmem [resolvable:$true] %s139
      %s141 = sshll.u32 %s2, 4
      %s142 = int_to_ptr.hbm [resolvable:$true] %s141
      %144 = dma.vmem_to_hbm [thread:$0]  %s140, 128, %s142, [#allocation4]
    $region21: #{tpu_custom_call.1} parent=1 // pred_fallthru
      _
    // Predicated region
    $region22: #{tpu_custom_call.1} parent=1 // pred_check
      _
    $region23: #{tpu_custom_call.1} parent=1 // pred_check_branch
      %146 = sbr.rel (0) target = $region25
    $region24: #{tpu_custom_call.1} parent=1 // pred_region
      %148 = dma.done [#allocation4], 128
    $region25: #{tpu_custom_call.1} parent=1 // pred_fallthru
      _
    %149 = vsyncpa [#allocation3], 1
    %150 = vsyncpa [#allocation6], 1
    %151 = vsyncpa [#allocation4], 1

</llo_original>
